<compile_context>
chip_gen: v6e
topology: v6e:2x2x1
jax: 0.10.0
libtpu: 0.0.40
codegen_flags: <defaults>
</compile_context>

<pallas_src>
import jax
import jax.numpy as jnp
from jax.experimental import pallas as pl
from jax.experimental.pallas import tpu as pltpu


# ----------------------------------------------------------------------------
# Single-step kernel: exact Net.forward (x, hidden) -> (out, new_hidden)
# ----------------------------------------------------------------------------
def rnn_cell_kernel(x_ref, h_ref, w_ref, bh_ref, wo_ref, bo_ref,
                    out_ref, newh_ref):
    # combined = cat(x, hidden, -1); one fused contraction against W_hidden.T.
    combined = jnp.concatenate([x_ref[...], h_ref[...]], axis=-1)    # (B, I+H)
    hidden = (jnp.dot(combined, w_ref[...], preferred_element_type=jnp.float32)
              + bh_ref[...])                                         # (B, H)
    out = (jnp.dot(hidden, wo_ref[...], preferred_element_type=jnp.float32)
           + bo_ref[...])                                            # (B, C)
    newh_ref[...] = hidden.astype(newh_ref.dtype)
    out_ref[...] = out.astype(out_ref.dtype)


def rnn_cell(x, hidden, w_comb, b_h, w_o, b_o):
    """Single step of Net.forward.  Returns (out, new_hidden)."""
    B = x.shape[0]
    H = hidden.shape[-1]
    C = w_o.shape[-1]
    vmem = pl.BlockSpec(memory_space=pltpu.MemorySpace.VMEM)
    return pl.pallas_call(
        rnn_cell_kernel,
        out_shape=(
            jax.ShapeDtypeStruct((B, C), x.dtype),
            jax.ShapeDtypeStruct((B, H), x.dtype),
        ),
        in_specs=[vmem] * 6,
        out_specs=(vmem, vmem),
        # hidden (input 1) is updated in place as new_hidden (output 1).
        input_output_aliases={1: 1},
    )(x, hidden, w_comb, b_h, w_o, b_o)


# ----------------------------------------------------------------------------
# Fused sequence kernel: the same cell applied over T steps in one pallas_call.
# Hidden is carried in the VMEM-resident final-hidden output block (constant
# index_map across the time axis), weights stay resident for the whole grid.
# ----------------------------------------------------------------------------
def rnn_seq_kernel(xs_ref, h0_ref, w_ref, bh_ref, wo_ref, bo_ref,
                   outs_ref, h_ref):
    t = pl.program_id(0)

    @pl.when(t == 0)
    def _init():
        h_ref[...] = h0_ref[...]

    combined = jnp.concatenate([xs_ref[0], h_ref[...]], axis=-1)     # (B, I+H)
    hidden = (jnp.dot(combined, w_ref[...], preferred_element_type=jnp.float32)
              + bh_ref[...])
    out = (jnp.dot(hidden, wo_ref[...], preferred_element_type=jnp.float32)
           + bo_ref[...])
    outs_ref[0] = out.astype(outs_ref.dtype)
    h_ref[...] = hidden.astype(h_ref.dtype)                          # carry


def rnn_forward_fused(xs, h0, w_comb, b_h, w_o, b_o):
    """Run the cell over a sequence xs: (T, B, I).  Returns (outs, h_T)."""
    T, B, I = xs.shape
    H = h0.shape[-1]
    C = w_o.shape[-1]
    const = lambda t: (0, 0)
    return pl.pallas_call(
        rnn_seq_kernel,
        out_shape=(
            jax.ShapeDtypeStruct((T, B, C), xs.dtype),
            jax.ShapeDtypeStruct((B, H), xs.dtype),
        ),
        grid=(T,),
        in_specs=[
            pl.BlockSpec((1, B, I), lambda t: (t, 0, 0)),   # x_t streamed per step
            pl.BlockSpec((B, H), const),                    # h0, read once
            pl.BlockSpec((I + H, H), const),                # weights resident
            pl.BlockSpec((1, H), const),
            pl.BlockSpec((H, C), const),
            pl.BlockSpec((1, C), const),
        ],
        out_specs=(
            pl.BlockSpec((1, B, C), lambda t: (t, 0, 0)),   # per-step logits
            pl.BlockSpec((B, H), const),                    # VMEM-resident hidden carry
        ),
        compiler_params=pltpu.CompilerParams(
            dimension_semantics=("arbitrary",)),            # sequential recurrence
    )(xs, h0, w_comb, b_h, w_o, b_o)


# ----------------------------------------------------------------------------
# Parameter helpers
# ----------------------------------------------------------------------------
def prepare_params(w_hidden, b_hidden, w_out, b_out):
    """One-time layout prep (hoisted out of the per-step path).

    w_hidden: (H, I+H) PyTorch layout  -> w_comb (I+H, H)
    w_out:    (C, H)                   -> w_o    (H, C)
    biases reshaped to 2-D rows once.
    (At realistic sizes, cast w_comb / w_o to bf16 here for the v6e/v7x MXU.)
    """
    w_comb = jnp.transpose(w_hidden)          # (I+H, H)
    w_o = jnp.transpose(w_out)                # (H, C)
    b_h = b_hidden.reshape(1, -1)             # (1, H)
    b_o = b_out.reshape(1, -1)                # (1, C)
    return w_comb, b_h, w_o, b_o


def init_params(key, input_size, hidden_size, num_classes, dtype=jnp.float32):
    """Deterministic init mimicking nn.Linear's U(-1/sqrt(fan_in), 1/sqrt(fan_in))."""
    k1, k2, k3, k4 = jax.random.split(key, 4)
    fan_h = input_size + hidden_size
    lim_h = 1.0 / jnp.sqrt(fan_h)
    lim_o = 1.0 / jnp.sqrt(hidden_size)
    w_hidden = jax.random.uniform(k1, (hidden_size, fan_h), dtype, -lim_h, lim_h)
    b_hidden = jax.random.uniform(k2, (hidden_size,), dtype, -lim_h, lim_h)
    w_out = jax.random.uniform(k3, (num_classes, hidden_size), dtype, -lim_o, lim_o)
    b_out = jax.random.uniform(k4, (num_classes,), dtype, -lim_o, lim_o)
    return w_hidden, b_hidden, w_out, b_out


if __name__ == "__main__":
    key = jax.random.PRNGKey(0)
    B, input_size, hidden_size, num_classes = 8, 16, 32, 8
    T = 6  # timesteps for the fused-sequence demo

    kx, kh, kp, ks = jax.random.split(key, 4)
    x = jax.random.normal(kx, (B, input_size), jnp.float32)
    hidden0 = jax.random.normal(kh, (B, hidden_size), jnp.float32)
    xs = jax.random.normal(ks, (T, B, input_size), jnp.float32)

    w_hidden, b_hidden, w_out, b_out = init_params(
        kp, input_size, hidden_size, num_classes)
    params = prepare_params(w_hidden, b_hidden, w_out, b_out)

    # --- single step (exact Net.forward semantics) ---------------------------
    out, new_hidden = rnn_cell(x, hidden0, *params)
    jax.block_until_ready((out, new_hidden))

    combined = jnp.concatenate([x, hidden0], axis=-1)
    ref_hidden = combined @ w_hidden.T + b_hidden
    ref_out = ref_hidden @ w_out.T + b_out
    assert jnp.allclose(out, ref_out, atol=1e-4, rtol=1e-4)
    assert jnp.allclose(new_hidden, ref_hidden, atol=1e-4, rtol=1e-4)

    # --- fused sequence (time loop inside one kernel) ------------------------
    outs, hT = rnn_forward_fused(xs, hidden0, *params)
    jax.block_until_ready((outs, hT))

    h = hidden0
    ref_outs = []
    for t in range(T):
        comb_t = jnp.concatenate([xs[t], h], axis=-1)
        h = comb_t @ w_hidden.T + b_hidden
        ref_outs.append(h @ w_out.T + b_out)
    ref_outs = jnp.stack(ref_outs, axis=0)
    assert jnp.allclose(outs, ref_outs, atol=1e-4, rtol=1e-4)
    assert jnp.allclose(hT, h, atol=1e-4, rtol=1e-4)

    print("KERNEL_OK")
</pallas_src>

<mosaic_0001>
module attributes {stable_mosaic.version = 11 : i64} {
  func.func @rnn_cell_kernel(%arg0: memref<8x16xf32, #tpu.memory_space<vmem>>, %arg1: memref<8x32xf32, #tpu.memory_space<vmem>>, %arg2: memref<48x32xf32, #tpu.memory_space<vmem>>, %arg3: memref<1x32xf32, #tpu.memory_space<vmem>>, %arg4: memref<32x8xf32, #tpu.memory_space<vmem>>, %arg5: memref<1x8xf32, #tpu.memory_space<vmem>>, %arg6: memref<8x8xf32, #tpu.memory_space<vmem>>, %arg7: memref<8x32xf32, #tpu.memory_space<vmem>>) attributes {dimension_semantics = [], scalar_prefetch = 0 : i64, scratch_operands = 0 : i64, tpu.core_type = #tpu.core_type<tc>} {
    %c0 = arith.constant 0 : index
    %c0_0 = arith.constant 0 : index
    %0 = vector.load %arg0[%c0, %c0_0] : memref<8x16xf32, #tpu.memory_space<vmem>>, vector<8x16xf32>
    %c0_1 = arith.constant 0 : index
    %c0_2 = arith.constant 0 : index
    %1 = vector.load %arg1[%c0_1, %c0_2] : memref<8x32xf32, #tpu.memory_space<vmem>>, vector<8x32xf32>
    %2 = tpu.concatenate %0, %1 in 1 : vector<8x16xf32>, vector<8x32xf32> -> vector<8x48xf32>
    %c0_3 = arith.constant 0 : index
    %c0_4 = arith.constant 0 : index
    %3 = vector.load %arg2[%c0_3, %c0_4] : memref<48x32xf32, #tpu.memory_space<vmem>>, vector<48x32xf32>
    %cst = arith.constant dense<0.000000e+00> : vector<8x32xf32>
    %4 = tpu.matmul %2, %3, %cst {dimension_numbers = #tpu.dot_dimension_numbers<[1], [0], [0], [1], [0, 0, 1, 1], [], []>} : vector<8x48xf32>, vector<48x32xf32>, vector<8x32xf32> -> vector<8x32xf32>
    %c0_5 = arith.constant 0 : index
    %c0_6 = arith.constant 0 : index
    %5 = vector.load %arg3[%c0_5, %c0_6] : memref<1x32xf32, #tpu.memory_space<vmem>>, vector<1x32xf32>
    %6 = vector.broadcast %5 : vector<1x32xf32> to vector<8x32xf32>
    %7 = arith.addf %4, %6 : vector<8x32xf32>
    %c0_7 = arith.constant 0 : index
    %c0_8 = arith.constant 0 : index
    %8 = vector.load %arg4[%c0_7, %c0_8] : memref<32x8xf32, #tpu.memory_space<vmem>>, vector<32x8xf32>
    %cst_9 = arith.constant dense<0.000000e+00> : vector<8x8xf32>
    %9 = tpu.matmul %7, %8, %cst_9 {dimension_numbers = #tpu.dot_dimension_numbers<[1], [0], [0], [1], [0, 0, 1, 1], [], []>} : vector<8x32xf32>, vector<32x8xf32>, vector<8x8xf32> -> vector<8x8xf32>
    %c0_10 = arith.constant 0 : index
    %c0_11 = arith.constant 0 : index
    %10 = vector.load %arg5[%c0_10, %c0_11] : memref<1x8xf32, #tpu.memory_space<vmem>>, vector<1x8xf32>
    %11 = vector.broadcast %10 : vector<1x8xf32> to vector<8x8xf32>
    %12 = arith.addf %9, %11 : vector<8x8xf32>
    %c0_12 = arith.constant 0 : index
    %c0_13 = arith.constant 0 : index
    %13 = vector.load %arg7[%c0_12, %c0_13] : memref<8x32xf32, #tpu.memory_space<vmem>>, vector<8x32xf32>
    tpu.vector_store %arg7[%c0_12, %c0_13], %7 {strides = array<i32>} : memref<8x32xf32, #tpu.memory_space<vmem>>, vector<8x32xf32>,
    %c0_14 = arith.constant 0 : index
    %c0_15 = arith.constant 0 : index
    %14 = vector.load %arg6[%c0_14, %c0_15] : memref<8x8xf32, #tpu.memory_space<vmem>>, vector<8x8xf32>
    tpu.vector_store %arg6[%c0_14, %c0_15], %12 {strides = array<i32>} : memref<8x8xf32, #tpu.memory_space<vmem>>, vector<8x8xf32>,
    return
  }
}

</mosaic_0001>

<llo_original>
// kernel: tpu_custom_call.1
$region0: #{tpu_custom_call.1}
  #allocation0 [shape = 'u32[]', space=smem, size = 0x4, offset = 0x4, fixed_abs, tag = 'smem constant byte address 0x4 - core index']
  #allocation1 [shape = 'u32[144,128]{1,0:T(1,128)}', space=vmem, size = 0x12000, scoped, tag = 'internal scratch']
  %s0 = inlined_call_operand.vmem [shape: f32[8,16], index: 0, kind: input, shape index: {}]
  %s1 = inlined_call_operand.hbm [shape: f32[8,32], index: 1, kind: input, shape index: {}, may-alias: {1,7}]
  %s2 = inlined_call_operand.vmem [shape: f32[48,32], index: 2, kind: input, shape index: {}]
  %s3 = inlined_call_operand.vmem [shape: f32[1,32], index: 3, kind: input, shape index: {}]
  %s4 = inlined_call_operand.vmem [shape: f32[32,8], index: 4, kind: input, shape index: {}]
  %s5 = inlined_call_operand.vmem [shape: f32[1,8], index: 5, kind: input, shape index: {}]
  %s6 = inlined_call_operand.hbm [shape: f32[8,8], index: 6, kind: output, shape index: {0}]
  %s7 = inlined_call_operand.hbm [shape: f32[8,32], index: 7, kind: output, shape index: {1}, may-alias: {1,7}]
  %8 = xla_tuple %s6, %s7
  %s9 = sld [smem:[#allocation0]]
  $region46: #{tpu_custom_call.1} parent=0
    _
  %s11 = ssub.s32 1, %s9
  %s12 = scalar_select 0, %s11, %s9
  $region1: #{tpu_custom_call.1} parent=0
    #allocation2 [shape = 'u8[4096]{0}', space=vmem, size = 0x1000, scoped, tag = 'input window, operand 1, single buffered']
    #allocation3 [shape = 's32[1]{0}', space=sflag, size = 0x4, scoped, tag = 'scoped memory for tpu_custom_call.1']
    #allocation4 [shape = 's32[1]{0}', space=sflag, size = 0x4, scoped, tag = 'scoped memory for tpu_custom_call.1']
    #allocation5 [shape = 'u8[4096]{0}', space=vmem, size = 0x1000, scoped, tag = 'output window, operand 0, single buffered']
    #allocation6 [shape = 'u8[4096]{0}', space=vmem, size = 0x1000, scoped, tag = 'output window, operand 1, single buffered']
    #allocation7 [shape = 's32[1]{0}', space=sflag, size = 0x4, scoped, tag = 'scoped memory for tpu_custom_call.1']
    %13 = vsyncpa [#allocation3], 0
    %14 = vsyncpa [#allocation4], 0
    %15 = vsyncpa [#allocation7], 0
    // Predicated region
    $region2: #{tpu_custom_call.1} parent=1 // pred_check
      _
    $region3: #{tpu_custom_call.1} parent=1 // pred_check_branch
      %17 = sbr.rel (0) target = $region5
    $region4: #{tpu_custom_call.1} parent=1 // pred_region
      _
    $region5: #{tpu_custom_call.1} parent=1 // pred_fallthru
      _
    // Predicated region
    $region6: #{tpu_custom_call.1} parent=1 // pred_check
      _
    $region7: #{tpu_custom_call.1} parent=1 // pred_check_branch
      %19 = sbr.rel (0) target = $region9
    $region8: #{tpu_custom_call.1} parent=1 // pred_region
      %s21 = ssub.s32 128, 128
      %22 = vsyncadd [#allocation3], %s21
      %s24 = sshll.u32 [#allocation2], 4
      %s25 = int_to_ptr.vmem [resolvable:$true] %s24
      %27 = dma.hbm_to_vmem [thread:$0]  %s1, 128, %s25, [#allocation3]
    $region9: #{tpu_custom_call.1} parent=1 // pred_fallthru
      _
    // Predicated region
    $region10: #{tpu_custom_call.1} parent=1 // pred_check
      _
    $region11: #{tpu_custom_call.1} parent=1 // pred_check_branch
      %29 = sbr.rel (0) target = $region13
    $region12: #{tpu_custom_call.1} parent=1 // pred_region
      _
    $region13: #{tpu_custom_call.1} parent=1 // pred_fallthru
      _
    // Predicated region
    $region14: #{tpu_custom_call.1} parent=1 // pred_check
      _
    $region15: #{tpu_custom_call.1} parent=1 // pred_check_branch
      %31 = sbr.rel (0) target = $region17
    $region16: #{tpu_custom_call.1} parent=1 // pred_region
      _
    $region17: #{tpu_custom_call.1} parent=1 // pred_fallthru
      _
    // Predicated region
    $region18: #{tpu_custom_call.1} parent=1 // pred_check
      _
    $region19: #{tpu_custom_call.1} parent=1 // pred_check_branch
      %33 = sbr.rel (0) target = $region21
    $region20: #{tpu_custom_call.1} parent=1 // pred_region
      _
    $region21: #{tpu_custom_call.1} parent=1 // pred_fallthru
      _
    // Predicated region
    $region22: #{tpu_custom_call.1} parent=1 // pred_check
      _
    $region23: #{tpu_custom_call.1} parent=1 // pred_check_branch
      %35 = sbr.rel (0) target = $region25
    $region24: #{tpu_custom_call.1} parent=1 // pred_region
      _
    $region25: #{tpu_custom_call.1} parent=1 // pred_fallthru
      _
    // Predicated region
    $region26: #{tpu_custom_call.1} parent=1 // pred_check
      _
    $region27: #{tpu_custom_call.1} parent=1 // pred_check_branch
      %37 = sbr.rel (0) target = $region29
    $region28: #{tpu_custom_call.1} parent=1 // pred_region
      %38 = dma.done [#allocation3], 128
    $region29: #{tpu_custom_call.1} parent=1 // pred_fallthru
      _
    %v39 = vld [vmem:[%s0] sm:$0xff]
    %v40 = vld [vmem:[#allocation2] sm:$0xff]
    %42 = vrot.lane.b32.xlu0 %v40, 16
    %v43 = vpop.permute.xlu0 %42
    %vm45 = vcmask 130048
    %v46 = vsel %vm45, %v39, %v43
    %v47 = vld [vmem:[%s2] sm:$0xff]
    %v48 = vld [vmem:[%s2 + $0x8] sm:$0xff]
    %v49 = vld [vmem:[%s2 + $0x10] sm:$0xff]
    %v50 = vld [vmem:[%s2 + $0x18] sm:$0xff]
    %v51 = vld [vmem:[%s2 + $0x20] sm:$0xff]
    %v52 = vld [vmem:[%s2 + $0x28] sm:$0xff]
    %v53 = vld [vmem:[%s3] sm:$0x1]
    %v55 = vlaneseq
    %v56 = vshrl.u32 %v55, 7
    %v57 = vsub.s32 0, %v56
    %v58 = vrot.slane %v53, %v57
    %vm60 = vcmask 392192
    %v62 = vsel %vm60, %v46, 0
    %64 = vmatprep.subr.mxu0 0.0
    %65 = vmatpush1.msra.mxu0 0.0
    %66 = vmatprep.subr.mxu0 0.0
    %67 = vmatpush1.msra.mxu0 0.0
    %68 = vmatprep.subr.mxu0 0.0
    %69 = vmatpush1.msra.mxu0 0.0
    %70 = vmatprep.subr.mxu0 0.0
    %71 = vmatpush1.msra.mxu0 0.0
    %72 = vmatprep.subr.mxu0 0.0
    %73 = vmatpush1.msra.mxu0 0.0
    %74 = vmatprep.subr.mxu0 0.0
    %75 = vmatpush1.msra.mxu0 0.0
    %76 = vmatprep.subr.mxu0 0.0
    %77 = vmatpush1.msra.mxu0 0.0
    %78 = vmatprep.subr.mxu0 0.0
    %79 = vmatpush1.msra.mxu0 0.0
    %80 = vmatprep.subr.mxu0 0.0
    %81 = vmatpush1.msra.mxu0 0.0
    %82 = vmatprep.subr.mxu0 0.0
    %83 = vmatpush1.msra.mxu0 0.0
    %84 = vmatprep.subr.mxu0 0.0
    %85 = vmatpush1.msra.mxu0 %v52
    %86 = vmatprep.subr.mxu0 0.0
    %87 = vmatpush1.msra.mxu0 %v51
    %88 = vmatprep.subr.mxu0 0.0
    %89 = vmatpush1.msra.mxu0 %v50
    %90 = vmatprep.subr.mxu0 0.0
    %91 = vmatpush1.msra.mxu0 %v49
    %92 = vmatprep.subr.mxu0 0.0
    %93 = vmatpush1.msra.mxu0 %v48
    %94 = vmatprep.subr.mxu0 0.0
    %95 = vmatpush1.msra.mxu0 %v47
    %96 = vmatprep.subr.mxu0 0.0
    %97 = vmatpush2.msra.mxu0 0.0
    %98 = vmatprep.subr.mxu0 0.0
    %99 = vmatpush2.msra.mxu0 0.0
    %100 = vmatprep.subr.mxu0 0.0
    %101 = vmatpush2.msra.mxu0 0.0
    %102 = vmatprep.subr.mxu0 0.0
    %103 = vmatpush2.msra.mxu0 0.0
    %104 = vmatprep.subr.mxu0 0.0
    %105 = vmatpush2.msra.mxu0 0.0
    %106 = vmatprep.subr.mxu0 0.0
    %107 = vmatpush2.msra.mxu0 0.0
    %108 = vmatprep.subr.mxu0 0.0
    %109 = vmatpush2.msra.mxu0 0.0
    %110 = vmatprep.subr.mxu0 0.0
    %111 = vmatpush2.msra.mxu0 0.0
    %112 = vmatprep.subr.mxu0 0.0
    %113 = vmatpush2.msra.mxu0 0.0
    %114 = vmatprep.subr.mxu0 0.0
    %115 = vmatpush2.msra.mxu0 0.0
    %116 = vmatprep.subr.mxu0 0.0
    %117 = vmatpush2.msra.mxu0 0.0
    %118 = vmatprep.subr.mxu0 0.0
    %119 = vmatpush2.msra.mxu0 0.0
    %120 = vmatprep.subr.mxu0 0.0
    %121 = vmatpush2.msra.mxu0 0.0
    %122 = vmatprep.subr.mxu0 0.0
    %123 = vmatpush2.msra.mxu0 0.0
    %124 = vmatprep.subr.mxu0 0.0
    %125 = vmatpush2.msra.mxu0 0.0
    %126 = vmatprep.subr.mxu0 0.0
    %127 = vmatpush2.msra.mxu0 0.0
    %128 = vmatprep.mubr.f32.mxu0 0.0
    %129 = vmatmul.mubr.f32.gmra.mxu0 %v62
    %v130 = vpop.f32.mrf.mxu0
    %v131 = vadd.f32 %v58, %v130
    %v132 = vpop.f32.mrf.mxu0
    %133 = vdwg.mxu0
    %v134 = vld [vmem:[%s4] sm:$0xff]
    %v135 = vld [vmem:[%s4 + $0x8] sm:$0xff]
    %v136 = vld [vmem:[%s4 + $0x10] sm:$0xff]
    %v137 = vld [vmem:[%s4 + $0x18] sm:$0xff]
    %v138 = vld [vmem:[%s5] sm:$0x1]
    %v140 = vlaneseq
    %v141 = vshrl.u32 %v140, 7
    %v142 = vsub.s32 0, %v141
    %v143 = vrot.slane %v138, %v142
    %vm145 = vcmask 261120
    %v147 = vsel %vm145, %v131, 0
    %149 = vmatprep.subr.mxu0 0.0
    %150 = vmatpush1.msra.mxu0 0.0
    %151 = vmatprep.subr.mxu0 0.0
    %152 = vmatpush1.msra.mxu0 0.0
    %153 = vmatprep.subr.mxu0 0.0
    %154 = vmatpush1.msra.mxu0 0.0
    %155 = vmatprep.subr.mxu0 0.0
    %156 = vmatpush1.msra.mxu0 0.0
    %157 = vmatprep.subr.mxu0 0.0
    %158 = vmatpush1.msra.mxu0 0.0
    %159 = vmatprep.subr.mxu0 0.0
    %160 = vmatpush1.msra.mxu0 0.0
    %161 = vmatprep.subr.mxu0 0.0
    %162 = vmatpush1.msra.mxu0 0.0
    %163 = vmatprep.subr.mxu0 0.0
    %164 = vmatpush1.msra.mxu0 0.0
    %165 = vmatprep.subr.mxu0 0.0
    %166 = vmatpush1.msra.mxu0 0.0
    %167 = vmatprep.subr.mxu0 0.0
    %168 = vmatpush1.msra.mxu0 0.0
    %169 = vmatprep.subr.mxu0 0.0
    %170 = vmatpush1.msra.mxu0 0.0
    %171 = vmatprep.subr.mxu0 0.0
    %172 = vmatpush1.msra.mxu0 0.0
    %173 = vmatprep.subr.mxu0 0.0
    %174 = vmatpush1.msra.mxu0 %v137
    %175 = vmatprep.subr.mxu0 0.0
    %176 = vmatpush1.msra.mxu0 %v136
    %177 = vmatprep.subr.mxu0 0.0
    %178 = vmatpush1.msra.mxu0 %v135
    %179 = vmatprep.subr.mxu0 0.0
    %180 = vmatpush1.msra.mxu0 %v134
    %181 = vmatprep.subr.mxu0 0.0
    %182 = vmatpush2.msra.mxu0 0.0
    %183 = vmatprep.subr.mxu0 0.0
    %184 = vmatpush2.msra.mxu0 0.0
    %185 = vmatprep.subr.mxu0 0.0
    %186 = vmatpush2.msra.mxu0 0.0
    %187 = vmatprep.subr.mxu0 0.0
    %188 = vmatpush2.msra.mxu0 0.0
    %189 = vmatprep.subr.mxu0 0.0
    %190 = vmatpush2.msra.mxu0 0.0
    %191 = vmatprep.subr.mxu0 0.0
    %192 = vmatpush2.msra.mxu0 0.0
    %193 = vmatprep.subr.mxu0 0.0
    %194 = vmatpush2.msra.mxu0 0.0
    %195 = vmatprep.subr.mxu0 0.0
    %196 = vmatpush2.msra.mxu0 0.0
    %197 = vmatprep.subr.mxu0 0.0
    %198 = vmatpush2.msra.mxu0 0.0
    %199 = vmatprep.subr.mxu0 0.0
    %200 = vmatpush2.msra.mxu0 0.0
    %201 = vmatprep.subr.mxu0 0.0
    %202 = vmatpush2.msra.mxu0 0.0
    %203 = vmatprep.subr.mxu0 0.0
    %204 = vmatpush2.msra.mxu0 0.0
    %205 = vmatprep.subr.mxu0 0.0
    %206 = vmatpush2.msra.mxu0 0.0
    %207 = vmatprep.subr.mxu0 0.0
    %208 = vmatpush2.msra.mxu0 0.0
    %209 = vmatprep.subr.mxu0 0.0
    %210 = vmatpush2.msra.mxu0 0.0
    %211 = vmatprep.subr.mxu0 0.0
    %212 = vmatpush2.msra.mxu0 0.0
    %213 = vmatprep.mubr.f32.mxu0 0.0
    %214 = vmatmul.mubr.f32.gmra.mxu0 %v147
    %v215 = vpop.f32.mrf.mxu0
    %v216 = vadd.f32 %v143, %v215
    %v217 = vpop.f32.mrf.mxu0
    %218 = vdwg.mxu0
    %219 = vst.msk [vmem:[#allocation6] sm:$0xff] %vm145, %v131
    %vm220 = vcmask 64512
    %221 = vst.msk [vmem:[#allocation5] sm:$0xff] %vm220, %v216
    // Predicated region
    $region30: #{tpu_custom_call.1} parent=1 // pred_check
      _
    $region31: #{tpu_custom_call.1} parent=1 // pred_check_branch
      %223 = sbr.rel (0) target = $region33
    $region32: #{tpu_custom_call.1} parent=1 // pred_region
      %s225 = ssub.s32 128, 128
      %226 = vsyncadd [#allocation4], %s225
      %s228 = sshll.u32 [#allocation5], 4
      %s229 = int_to_ptr.vmem [resolvable:$true] %s228
      %231 = dma.vmem_to_hbm [thread:$0]  %s229, 128, %s6, [#allocation4]
    $region33: #{tpu_custom_call.1} parent=1 // pred_fallthru
      _
    // Predicated region
    $region34: #{tpu_custom_call.1} parent=1 // pred_check
      _
    $region35: #{tpu_custom_call.1} parent=1 // pred_check_branch
      %233 = sbr.rel (0) target = $region37
    $region36: #{tpu_custom_call.1} parent=1 // pred_region
      %s235 = ssub.s32 128, 128
      %236 = vsyncadd [#allocation7], %s235
      %s238 = sshll.u32 [#allocation6], 4
      %s239 = int_to_ptr.vmem [resolvable:$true] %s238
      %241 = dma.vmem_to_hbm [thread:$0]  %s239, 128, %s7, [#allocation7]
    $region37: #{tpu_custom_call.1} parent=1 // pred_fallthru
      _
    // Predicated region
    $region38: #{tpu_custom_call.1} parent=1 // pred_check
      _
    $region39: #{tpu_custom_call.1} parent=1 // pred_check_branch
      %243 = sbr.rel (0) target = $region41
    $region40: #{tpu_custom_call.1} parent=1 // pred_region
      %244 = dma.done [#allocation4], 128
    $region41: #{tpu_custom_call.1} parent=1 // pred_fallthru
      _
    // Predicated region
    $region42: #{tpu_custom_call.1} parent=1 // pred_check
      _
    $region43: #{tpu_custom_call.1} parent=1 // pred_check_branch
      %246 = sbr.rel (0) target = $region45
    $region44: #{tpu_custom_call.1} parent=1 // pred_region
      %247 = dma.done [#allocation7], 128
    $region45: #{tpu_custom_call.1} parent=1 // pred_fallthru
      _
    %248 = vsyncpa [#allocation3], 1
    %249 = vsyncpa [#allocation4], 1
    %250 = vsyncpa [#allocation7], 1

</llo_original>
